<compile_context>
chip_gen: v7x
topology: tpu7x:2x2x1
jax: 0.10.0
libtpu: 0.0.40
codegen_flags: <defaults>
</compile_context>

<pallas_src>
import jax
import jax.numpy as jnp
from jax.experimental import pallas as pl
from jax.experimental.pallas import tpu as pltpu


def _tv_loss_kernel(x_ref, h_ref, w_ref):
    """Accumulate squared H/W finite differences of one (tile_bc, H, W) block.

    x_ref : (tile_bc, H, W) VMEM input tile
    h_ref : (1, 1) f32 VMEM accumulator for sum((x[:, 1:, :] - x[:, :-1, :])**2)
    w_ref : (1, 1) f32 VMEM accumulator for sum((x[:, :, 1:] - x[:, :, :-1])**2)
    """

    @pl.when(pl.program_id(0) == 0)
    def _():
        h_ref[...] = jnp.zeros_like(h_ref)
        w_ref[...] = jnp.zeros_like(w_ref)

    x = x_ref[...].astype(jnp.float32)
    dh = x[:, 1:, :] - x[:, :-1, :]
    dw = x[:, :, 1:] - x[:, :, :-1]
    h_ref[...] += jnp.sum(dh * dh)
    w_ref[...] += jnp.sum(dw * dw)


def tv_loss(x, tv_loss_weight=1.0, *, block_bytes=4 * 1024 * 1024):
    """TVLoss forward. x: (B, C, H, W). Returns a scalar (float32)."""
    B, C, H, W = x.shape
    count_h = C * (H - 1) * W
    count_w = max(C * H * (W - 1), 1)

    bc = B * C
    x3 = x.reshape(bc, H, W)

    # Pick the largest batch-of-slices tile that stays within the VMEM budget
    # (double-buffered input must fit the v7x 32 MiB default scoped VMEM).
    slice_bytes = max(H * W * x.dtype.itemsize, 1)
    tile_bc = int(max(1, min(bc, block_bytes // slice_bytes)))
    grid = pl.cdiv(bc, tile_bc)
    padded_bc = grid * tile_bc
    if padded_bc != bc:
        # Zero slices have zero finite differences -> exact padding.
        x3 = jnp.pad(x3, ((0, padded_bc - bc), (0, 0), (0, 0)))

    h_tv, w_tv = pl.pallas_call(
        _tv_loss_kernel,
        out_shape=(
            jax.ShapeDtypeStruct((1, 1), jnp.float32),
            jax.ShapeDtypeStruct((1, 1), jnp.float32),
        ),
        grid_spec=pltpu.PrefetchScalarGridSpec(
            num_scalar_prefetch=0,
            grid=(grid,),
            in_specs=[pl.BlockSpec((tile_bc, H, W), lambda i: (i, 0, 0))],
            out_specs=[
                pl.BlockSpec((1, 1), lambda i: (0, 0)),
                pl.BlockSpec((1, 1), lambda i: (0, 0)),
            ],
        ),
        compiler_params=pltpu.CompilerParams(
            dimension_semantics=("arbitrary",),  # accumulator -> reduction axis
        ),
    )(x3)

    h_tv = h_tv[0, 0]
    w_tv = w_tv[0, 0]
    # Final scalar combine (compile-time constant counts), matching PyTorch.
    return tv_loss_weight * 2.0 * (h_tv / count_h + w_tv / count_w) / B


def _reference_tv_loss(x, weight=1.0):
    """Pure-JAX transcription of the PyTorch TVLoss forward."""
    B, C, H, W = x.shape
    count_h = C * (H - 1) * W
    count_w = max(C * H * (W - 1), 1)
    h_tv = jnp.sum((x[:, :, 1:, :] - x[:, :, : H - 1, :]) ** 2)
    w_tv = jnp.sum((x[:, :, :, 1:] - x[:, :, :, : W - 1]) ** 2)
    return weight * 2.0 * (h_tv / count_h + w_tv / count_w) / B


if __name__ == "__main__":
    key = jax.random.PRNGKey(0)

    # Primary check: single grid step (whole batch in one block).
    x = jax.random.normal(key, (2, 4, 16, 16), dtype=jnp.float32)
    y = jax.block_until_ready(tv_loss(x, 1.0))
    y_ref = _reference_tv_loss(x, 1.0)
    assert jnp.allclose(y, y_ref, atol=1e-5, rtol=1e-5), (y, y_ref)

    # Secondary check: force a multi-step grid (accumulator path) plus
    # zero-padding of the ragged B*C axis.
    key2 = jax.random.PRNGKey(1)
    x2 = jax.random.normal(key2, (2, 3, 16, 16), dtype=jnp.float32)
    y2 = jax.block_until_ready(
        tv_loss(x2, 0.5, block_bytes=4 * 16 * 16 * 4)  # tile_bc=4, grid=2, padded
    )
    y2_ref = _reference_tv_loss(x2, 0.5)
    assert jnp.allclose(y2, y2_ref, atol=1e-5, rtol=1e-5), (y2, y2_ref)

    print("KERNEL_OK")
</pallas_src>

<mosaic_0001>
module attributes {stable_mosaic.version = 11 : i64} {
  func.func @_tv_loss_kernel(%arg0: i32, %arg1: memref<8x16x16xf32, #tpu.memory_space<vmem>>, %arg2: memref<1x1xf32, #tpu.memory_space<vmem>>, %arg3: memref<1x1xf32, #tpu.memory_space<vmem>>) attributes {dimension_semantics = [#tpu.dimension_semantics<arbitrary>], iteration_bounds = array<i64: 1>, scalar_prefetch = 0 : i64, scratch_operands = 0 : i64, tpu.core_type = #tpu.core_type<tc>, window_params = [{transform_indices = @transform_0, window_bounds = array<i64: 8, 16, 16>}, {pipeline_mode = #tpu.pipeline_mode<synchronous>, transform_indices = @transform_1, window_bounds = array<i64: 1, 1>}, {pipeline_mode = #tpu.pipeline_mode<synchronous>, transform_indices = @transform_2, window_bounds = array<i64: 1, 1>}]} {
    %c0_i32 = arith.constant 0 : i32
    %0 = arith.cmpi eq, %arg0, %c0_i32 : i32
    %1 = arith.extui %0 : i1 to i32
    %c0_i32_0 = arith.constant 0 : i32
    %2 = arith.cmpi ne, %1, %c0_i32_0 : i32
    scf.if %2 {
      %cst_12 = arith.constant 0.000000e+00 : f32
      %28 = vector.broadcast %cst_12 : f32 to vector<1x1xf32>
      %c0_13 = arith.constant 0 : index
      %c0_14 = arith.constant 0 : index
      %29 = vector.load %arg2[%c0_13, %c0_14] : memref<1x1xf32, #tpu.memory_space<vmem>>, vector<1x1xf32>
      tpu.vector_store %arg2[%c0_13, %c0_14], %28 {strides = array<i32>} : memref<1x1xf32, #tpu.memory_space<vmem>>, vector<1x1xf32>,
      %cst_15 = arith.constant 0.000000e+00 : f32
      %30 = vector.broadcast %cst_15 : f32 to vector<1x1xf32>
      %c0_16 = arith.constant 0 : index
      %c0_17 = arith.constant 0 : index
      %31 = vector.load %arg3[%c0_16, %c0_17] : memref<1x1xf32, #tpu.memory_space<vmem>>, vector<1x1xf32>
      tpu.vector_store %arg3[%c0_16, %c0_17], %30 {strides = array<i32>} : memref<1x1xf32, #tpu.memory_space<vmem>>, vector<1x1xf32>,
    } else {
    }
    %c0 = arith.constant 0 : index
    %c0_1 = arith.constant 0 : index
    %c0_2 = arith.constant 0 : index
    %3 = vector.load %arg1[%c0, %c0_1, %c0_2] : memref<8x16x16xf32, #tpu.memory_space<vmem>>, vector<8x16x16xf32>
    %4 = vector.extract_strided_slice %3 {offsets = [0, 1, 0], sizes = [8, 15, 16], strides = [1, 1, 1]} : vector<8x16x16xf32> to vector<8x15x16xf32>
    %5 = vector.extract_strided_slice %3 {offsets = [0, 0, 0], sizes = [8, 15, 16], strides = [1, 1, 1]} : vector<8x16x16xf32> to vector<8x15x16xf32>
    %6 = arith.subf %4, %5 : vector<8x15x16xf32>
    %7 = vector.extract_strided_slice %3 {offsets = [0, 0, 1], sizes = [8, 16, 15], strides = [1, 1, 1]} : vector<8x16x16xf32> to vector<8x16x15xf32>
    %8 = vector.extract_strided_slice %3 {offsets = [0, 0, 0], sizes = [8, 16, 15], strides = [1, 1, 1]} : vector<8x16x16xf32> to vector<8x16x15xf32>
    %9 = arith.subf %7, %8 : vector<8x16x15xf32>
    %c0_3 = arith.constant 0 : index
    %c0_4 = arith.constant 0 : index
    %10 = vector.load %arg2[%c0_3, %c0_4] : memref<1x1xf32, #tpu.memory_space<vmem>>, vector<1x1xf32>
    %11 = arith.mulf %6, %6 : vector<8x15x16xf32>
    %12 = vector.shape_cast %11 : vector<8x15x16xf32> to vector<1x8x15x16xf32>
    %cst = arith.constant dense<0.000000e+00> : vector<1xf32>
    %13 = vector.multi_reduction <add>, %12, %cst [1, 2, 3] : vector<1x8x15x16xf32> to vector<1xf32>
    %14 = vector.shape_cast %13 : vector<1xf32> to vector<1x1x1x1xf32>
    %15 = vector.extract %14[0, 0, 0, 0] : f32 from vector<1x1x1x1xf32>
    %16 = vector.broadcast %15 : f32 to vector<1x1xf32>
    %17 = arith.addf %10, %16 : vector<1x1xf32>
    %c0_5 = arith.constant 0 : index
    %c0_6 = arith.constant 0 : index
    %18 = vector.load %arg2[%c0_5, %c0_6] : memref<1x1xf32, #tpu.memory_space<vmem>>, vector<1x1xf32>
    tpu.vector_store %arg2[%c0_5, %c0_6], %17 {strides = array<i32>} : memref<1x1xf32, #tpu.memory_space<vmem>>, vector<1x1xf32>,
    %c0_7 = arith.constant 0 : index
    %c0_8 = arith.constant 0 : index
    %19 = vector.load %arg3[%c0_7, %c0_8] : memref<1x1xf32, #tpu.memory_space<vmem>>, vector<1x1xf32>
    %20 = arith.mulf %9, %9 : vector<8x16x15xf32>
    %21 = vector.shape_cast %20 : vector<8x16x15xf32> to vector<1x8x16x15xf32>
    %cst_9 = arith.constant dense<0.000000e+00> : vector<1xf32>
    %22 = vector.multi_reduction <add>, %21, %cst_9 [1, 2, 3] : vector<1x8x16x15xf32> to vector<1xf32>
    %23 = vector.shape_cast %22 : vector<1xf32> to vector<1x1x1x1xf32>
    %24 = vector.extract %23[0, 0, 0, 0] : f32 from vector<1x1x1x1xf32>
    %25 = vector.broadcast %24 : f32 to vector<1x1xf32>
    %26 = arith.addf %19, %25 : vector<1x1xf32>
    %c0_10 = arith.constant 0 : index
    %c0_11 = arith.constant 0 : index
    %27 = vector.load %arg3[%c0_10, %c0_11] : memref<1x1xf32, #tpu.memory_space<vmem>>, vector<1x1xf32>
    tpu.vector_store %arg3[%c0_10, %c0_11], %26 {strides = array<i32>} : memref<1x1xf32, #tpu.memory_space<vmem>>, vector<1x1xf32>,
    return
  }
  func.func @transform_0(%arg0: i32) -> (i32, i32, i32) {
    %c0_i32 = arith.constant 0 : i32
    %c0_i32_0 = arith.constant 0 : i32
    %c0_i32_1 = arith.constant 0 : i32
    return %arg0, %c0_i32, %c0_i32_0 : i32, i32, i32
  }
  func.func @transform_1(%arg0: i32) -> (i32, i32) {
    %c0_i32 = arith.constant 0 : i32
    %c0_i32_0 = arith.constant 0 : i32
    %c0_i32_1 = arith.constant 0 : i32
    return %c0_i32, %c0_i32_0 : i32, i32
  }
  func.func @transform_2(%arg0: i32) -> (i32, i32) {
    %c0_i32 = arith.constant 0 : i32
    %c0_i32_0 = arith.constant 0 : i32
    %c0_i32_1 = arith.constant 0 : i32
    return %c0_i32, %c0_i32_0 : i32, i32
  }
}

</mosaic_0001>

<llo_original>
// kernel: tpu_custom_call.1
$region0: #{tpu_custom_call.1}
  #allocation0 [shape = 'u32[]', space=smem, size = 0x4, offset = 0x4, fixed_abs, tag = 'smem constant byte address 0x4 - core index']
  #allocation1 [shape = 'u32[144,128]{1,0:T(1,128)}', space=vmem, size = 0x12000, scoped, tag = 'internal scratch']
  %s0 = inlined_call_operand.hbm [shape: f32[8,16,16], index: 0, kind: input, shape index: {}]
  %s1 = inlined_call_operand.hbm [shape: f32[1,1], index: 1, kind: output, shape index: {0}]
  %s2 = inlined_call_operand.hbm [shape: f32[1,1], index: 2, kind: output, shape index: {1}]
  %3 = xla_tuple %s1, %s2
  %s4 = sld [smem:[#allocation0]]
  $region30: #{tpu_custom_call.1} parent=0
    _
  %s6 = ssub.s32 1, %s4
  %s7 = scalar_select 0, %s6, %s4
  $region1: #{tpu_custom_call.1} parent=0
    #allocation2 [shape = 'u8[65536]{0}', space=vmem, size = 0x10000, scoped, tag = 'input window, operand 0, single buffered']
    #allocation3 [shape = 's32[1]{0}', space=sflag, size = 0x4, scoped, tag = 'scoped memory for tpu_custom_call.1']
    #allocation4 [shape = 's32[1]{0}', space=sflag, size = 0x4, scoped, tag = 'scoped memory for tpu_custom_call.1']
    #allocation5 [shape = 'u8[512]{0}', space=vmem, size = 0x400, scoped, tag = 'output window, operand 0, single buffered']
    #allocation6 [shape = 'u8[512]{0}', space=vmem, size = 0x400, scoped, tag = 'output window, operand 1, single buffered']
    #allocation7 [shape = 's32[1]{0}', space=sflag, size = 0x4, scoped, tag = 'scoped memory for tpu_custom_call.1']
    %8 = vsyncpa [#allocation3], 0
    %9 = vsyncpa [#allocation4], 0
    %10 = vsyncpa [#allocation7], 0
    // Predicated region
    $region2: #{tpu_custom_call.1} parent=1 // pred_check
      _
    $region3: #{tpu_custom_call.1} parent=1 // pred_check_branch
      %12 = sbr.rel (0) target = $region5
    $region4: #{tpu_custom_call.1} parent=1 // pred_region
      %s14 = ssub.s32 2048, 2048
      %15 = vsyncadd [#allocation3], %s14
      %s16 = sshll.u32 [#allocation2], 4
      %s17 = int_to_ptr.vmem [resolvable:$true] %s16
      %22 = dma.hbm_to_vmem [thread:$0]  %s0, 2048, %s17, [#allocation3], 128, 128, 8
    $region5: #{tpu_custom_call.1} parent=1 // pred_fallthru
      _
    // Predicated region
    $region6: #{tpu_custom_call.1} parent=1 // pred_check
      _
    $region7: #{tpu_custom_call.1} parent=1 // pred_check_branch
      %24 = sbr.rel (0) target = $region9
    $region8: #{tpu_custom_call.1} parent=1 // pred_region
      %25 = dma.done [#allocation3], 2048
    $region9: #{tpu_custom_call.1} parent=1 // pred_fallthru
      _
    %p26 = scmp.eq.s32.totalorder 0, 0
    // Predicated region
    $region10: #{tpu_custom_call.1} parent=1 // pred_check
      %p27 = pneg %p26
    $region11: #{tpu_custom_call.1} parent=1 // pred_check_branch
      %29 = sbr.rel (%p27) target = $region13
    $region12: #{tpu_custom_call.1} parent=1 // pred_region
      %vm30 = vcmask 0
      %31 = vst.msk [vmem:[#allocation5] sm:$0x1] %vm30, 0.0
      %32 = vst.msk [vmem:[#allocation6] sm:$0x1] %vm30, 0.0
    $region13: #{tpu_custom_call.1} parent=1 // pred_fallthru
      _
    %v33 = vld [vmem:[#allocation2] sm:$0xff]
    %v34 = vld [vmem:[#allocation2 + $0x8] sm:$0xff]
    %v35 = vld [vmem:[#allocation2 + $0x10] sm:$0xff]
    %v36 = vld [vmem:[#allocation2 + $0x18] sm:$0xff]
    %v37 = vld [vmem:[#allocation2 + $0x20] sm:$0xff]
    %v38 = vld [vmem:[#allocation2 + $0x28] sm:$0xff]
    %v39 = vld [vmem:[#allocation2 + $0x30] sm:$0xff]
    %v40 = vld [vmem:[#allocation2 + $0x38] sm:$0xff]
    %v41 = vld [vmem:[#allocation2 + $0x40] sm:$0xff]
    %v42 = vld [vmem:[#allocation2 + $0x48] sm:$0xff]
    %v43 = vld [vmem:[#allocation2 + $0x50] sm:$0xff]
    %v44 = vld [vmem:[#allocation2 + $0x58] sm:$0xff]
    %v45 = vld [vmem:[#allocation2 + $0x60] sm:$0xff]
    %v46 = vld [vmem:[#allocation2 + $0x68] sm:$0xff]
    %v47 = vld [vmem:[#allocation2 + $0x70] sm:$0xff]
    %v48 = vld [vmem:[#allocation2 + $0x78] sm:$0xff]
    %vm65 = vcmask 1040384
    %v66 = vrot.slane %v33, 7
    %v67 = vrot.slane %v34, 7
    %v68 = vsel %vm65, %v66, %v67
    %v69 = vrot.slane %v35, 7
    %v70 = vrot.slane %v36, 7
    %v71 = vsel %vm65, %v69, %v70
    %v72 = vrot.slane %v37, 7
    %v73 = vrot.slane %v38, 7
    %v74 = vsel %vm65, %v72, %v73
    %v75 = vrot.slane %v39, 7
    %v76 = vrot.slane %v40, 7
    %v77 = vsel %vm65, %v75, %v76
    %v78 = vrot.slane %v41, 7
    %v79 = vrot.slane %v42, 7
    %v80 = vsel %vm65, %v78, %v79
    %v81 = vrot.slane %v43, 7
    %v82 = vrot.slane %v44, 7
    %v83 = vsel %vm65, %v81, %v82
    %v84 = vrot.slane %v45, 7
    %v85 = vrot.slane %v46, 7
    %v86 = vsel %vm65, %v84, %v85
    %v87 = vrot.slane %v47, 7
    %v88 = vrot.slane %v48, 7
    %v89 = vsel %vm65, %v87, %v88
    %v106 = vsub.f32 %v33, %v66
    %v107 = vsub.f32 %v34, %v68
    %v108 = vsub.f32 %v35, %v69
    %v109 = vsub.f32 %v36, %v71
    %v110 = vsub.f32 %v37, %v72
    %v111 = vsub.f32 %v38, %v74
    %v112 = vsub.f32 %v39, %v75
    %v113 = vsub.f32 %v40, %v77
    %v114 = vsub.f32 %v41, %v78
    %v115 = vsub.f32 %v42, %v80
    %v116 = vsub.f32 %v43, %v81
    %v117 = vsub.f32 %v44, %v83
    %v118 = vsub.f32 %v45, %v84
    %v119 = vsub.f32 %v46, %v86
    %v120 = vsub.f32 %v47, %v87
    %v121 = vsub.f32 %v48, %v89
    %122 = vrot.lane.b32.xlu0 %v33, 1
    %v123 = vpop.permute.xlu0 %122
    %124 = vrot.lane.b32.xlu0 %v34, 1
    %v125 = vpop.permute.xlu0 %124
    %126 = vrot.lane.b32.xlu0 %v35, 1
    %v127 = vpop.permute.xlu0 %126
    %128 = vrot.lane.b32.xlu0 %v36, 1
    %v129 = vpop.permute.xlu0 %128
    %130 = vrot.lane.b32.xlu0 %v37, 1
    %v131 = vpop.permute.xlu0 %130
    %132 = vrot.lane.b32.xlu0 %v38, 1
    %v133 = vpop.permute.xlu0 %132
    %134 = vrot.lane.b32.xlu0 %v39, 1
    %v135 = vpop.permute.xlu0 %134
    %136 = vrot.lane.b32.xlu0 %v40, 1
    %v137 = vpop.permute.xlu0 %136
    %138 = vrot.lane.b32.xlu0 %v41, 1
    %v139 = vpop.permute.xlu0 %138
    %140 = vrot.lane.b32.xlu0 %v42, 1
    %v141 = vpop.permute.xlu0 %140
    %142 = vrot.lane.b32.xlu0 %v43, 1
    %v143 = vpop.permute.xlu0 %142
    %144 = vrot.lane.b32.xlu0 %v44, 1
    %v145 = vpop.permute.xlu0 %144
    %146 = vrot.lane.b32.xlu0 %v45, 1
    %v147 = vpop.permute.xlu0 %146
    %148 = vrot.lane.b32.xlu0 %v46, 1
    %v149 = vpop.permute.xlu0 %148
    %150 = vrot.lane.b32.xlu0 %v47, 1
    %v151 = vpop.permute.xlu0 %150
    %152 = vrot.lane.b32.xlu0 %v48, 1
    %v153 = vpop.permute.xlu0 %152
    %v170 = vsub.f32 %v33, %v123
    %v171 = vsub.f32 %v34, %v125
    %v172 = vsub.f32 %v35, %v127
    %v173 = vsub.f32 %v36, %v129
    %v174 = vsub.f32 %v37, %v131
    %v175 = vsub.f32 %v38, %v133
    %v176 = vsub.f32 %v39, %v135
    %v177 = vsub.f32 %v40, %v137
    %v178 = vsub.f32 %v41, %v139
    %v179 = vsub.f32 %v42, %v141
    %v180 = vsub.f32 %v43, %v143
    %v181 = vsub.f32 %v44, %v145
    %v182 = vsub.f32 %v45, %v147
    %v183 = vsub.f32 %v46, %v149
    %v184 = vsub.f32 %v47, %v151
    %v185 = vsub.f32 %v48, %v153
    %v186 = vld [vmem:[#allocation5] sm:$0x1]
    %v187 = vmul.f32 %v106, %v106
    %v188 = vmul.f32 %v107, %v107
    %v189 = vmul.f32 %v108, %v108
    %v190 = vmul.f32 %v109, %v109
    %v191 = vmul.f32 %v110, %v110
    %v192 = vmul.f32 %v111, %v111
    %v193 = vmul.f32 %v112, %v112
    %v194 = vmul.f32 %v113, %v113
    %v195 = vmul.f32 %v114, %v114
    %v196 = vmul.f32 %v115, %v115
    %v197 = vmul.f32 %v116, %v116
    %v198 = vmul.f32 %v117, %v117
    %v199 = vmul.f32 %v118, %v118
    %v200 = vmul.f32 %v119, %v119
    %v201 = vmul.f32 %v120, %v120
    %v202 = vmul.f32 %v121, %v121
    %vm219 = vcmask 1046528
    %v220 = vrot.slane %v187, 1
    %v221 = vrot.slane %v188, 1
    %v222 = vsel %vm219, %v220, %v221
    %v223 = vrot.slane %v189, 1
    %v224 = vrot.slane %v190, 1
    %v225 = vsel %vm219, %v223, %v224
    %v226 = vrot.slane %v191, 1
    %v227 = vrot.slane %v192, 1
    %v228 = vsel %vm219, %v226, %v227
    %v229 = vrot.slane %v193, 1
    %v230 = vrot.slane %v194, 1
    %v231 = vsel %vm219, %v229, %v230
    %v232 = vrot.slane %v195, 1
    %v233 = vrot.slane %v196, 1
    %v234 = vsel %vm219, %v232, %v233
    %v235 = vrot.slane %v197, 1
    %v236 = vrot.slane %v198, 1
    %v237 = vsel %vm219, %v235, %v236
    %v238 = vrot.slane %v199, 1
    %v239 = vrot.slane %v200, 1
    %v240 = vsel %vm219, %v238, %v239
    %v241 = vrot.slane %v201, 1
    %v242 = vrot.slane %v202, 1
    %v243 = vsel %vm219, %v241, %v242
    %vm260 = vcmask 130048
    %v261 = vsel %vm260, %v222, 0.0
    %vm262 = vcmask 129024
    %v263 = vsel %vm262, %v221, 0.0
    %v264 = vadd.f32 %v261, %v263
    %v265 = vsel %vm260, %v225, 0.0
    %v266 = vadd.f32 %v264, %v265
    %v267 = vsel %vm262, %v224, 0.0
    %v268 = vadd.f32 %v266, %v267
    %v269 = vsel %vm260, %v228, 0.0
    %v270 = vadd.f32 %v268, %v269
    %v271 = vsel %vm262, %v227, 0.0
    %v272 = vadd.f32 %v270, %v271
    %v273 = vsel %vm260, %v231, 0.0
    %v274 = vadd.f32 %v272, %v273
    %v275 = vsel %vm262, %v230, 0.0
    %v276 = vadd.f32 %v274, %v275
    %v277 = vsel %vm260, %v234, 0.0
    %v278 = vadd.f32 %v276, %v277
    %v279 = vsel %vm262, %v233, 0.0
    %v280 = vadd.f32 %v278, %v279
    %v281 = vsel %vm260, %v237, 0.0
    %v282 = vadd.f32 %v280, %v281
    %v283 = vsel %vm262, %v236, 0.0
    %v284 = vadd.f32 %v282, %v283
    %v285 = vsel %vm260, %v240, 0.0
    %v286 = vadd.f32 %v284, %v285
    %v287 = vsel %vm262, %v239, 0.0
    %v288 = vadd.f32 %v286, %v287
    %v289 = vsel %vm260, %v243, 0.0
    %v290 = vadd.f32 %v288, %v289
    %v291 = vsel %vm262, %v242, 0.0
    %v292 = vadd.f32 %v290, %v291
    %293 = vadd.xlane.f32.xlu0 %v292
    %v294 = vpop.xlane.xlu0 %293
    %v295 = vrot.slane %v294, 4
    %v296 = vadd.f32 %v294, %v295
    %v297 = vrot.slane %v296, 2
    %v298 = vadd.f32 %v296, %v297
    %v299 = vrot.slane %v298, 1
    %v300 = vadd.f32 %v298, %v299
    %s301 = vtos %v300
    %v302 = vstv %s301
    %v303 = vadd.f32 %v186, %v302
    %vm304 = vcmask 0
    %305 = vst.msk [vmem:[#allocation5] sm:$0x1] %vm304, %v303
    %v306 = vld [vmem:[#allocation6] sm:$0x1]
    %v307 = vmul.f32 %v170, %v170
    %v308 = vmul.f32 %v171, %v171
    %v309 = vmul.f32 %v172, %v172
    %v310 = vmul.f32 %v173, %v173
    %v311 = vmul.f32 %v174, %v174
    %v312 = vmul.f32 %v175, %v175
    %v313 = vmul.f32 %v176, %v176
    %v314 = vmul.f32 %v177, %v177
    %v315 = vmul.f32 %v178, %v178
    %v316 = vmul.f32 %v179, %v179
    %v317 = vmul.f32 %v180, %v180
    %v318 = vmul.f32 %v181, %v181
    %v319 = vmul.f32 %v182, %v182
    %v320 = vmul.f32 %v183, %v183
    %v321 = vmul.f32 %v184, %v184
    %v322 = vmul.f32 %v185, %v185
    %339 = vrot.lane.b32.xlu0 %v307, 127
    %v340 = vpop.permute.xlu0 %339
    %341 = vrot.lane.b32.xlu0 %v308, 127
    %v342 = vpop.permute.xlu0 %341
    %343 = vrot.lane.b32.xlu0 %v309, 127
    %v344 = vpop.permute.xlu0 %343
    %345 = vrot.lane.b32.xlu0 %v310, 127
    %v346 = vpop.permute.xlu0 %345
    %347 = vrot.lane.b32.xlu0 %v311, 127
    %v348 = vpop.permute.xlu0 %347
    %349 = vrot.lane.b32.xlu0 %v312, 127
    %v350 = vpop.permute.xlu0 %349
    %351 = vrot.lane.b32.xlu0 %v313, 127
    %v352 = vpop.permute.xlu0 %351
    %353 = vrot.lane.b32.xlu0 %v314, 127
    %v354 = vpop.permute.xlu0 %353
    %355 = vrot.lane.b32.xlu0 %v315, 127
    %v356 = vpop.permute.xlu0 %355
    %357 = vrot.lane.b32.xlu0 %v316, 127
    %v358 = vpop.permute.xlu0 %357
    %359 = vrot.lane.b32.xlu0 %v317, 127
    %v360 = vpop.permute.xlu0 %359
    %361 = vrot.lane.b32.xlu0 %v318, 127
    %v362 = vpop.permute.xlu0 %361
    %363 = vrot.lane.b32.xlu0 %v319, 127
    %v364 = vpop.permute.xlu0 %363
    %365 = vrot.lane.b32.xlu0 %v320, 127
    %v366 = vpop.permute.xlu0 %365
    %367 = vrot.lane.b32.xlu0 %v321, 127
    %v368 = vpop.permute.xlu0 %367
    %369 = vrot.lane.b32.xlu0 %v322, 127
    %v370 = vpop.permute.xlu0 %369
    %vm387 = vcmask 121856
    %v388 = vsel %vm387, %v340, 0.0
    %v389 = vsel %vm387, %v342, 0.0
    %v390 = vadd.f32 %v388, %v389
    %v391 = vsel %vm387, %v344, 0.0
    %v392 = vadd.f32 %v390, %v391
    %v393 = vsel %vm387, %v346, 0.0
    %v394 = vadd.f32 %v392, %v393
    %v395 = vsel %vm387, %v348, 0.0
    %v396 = vadd.f32 %v394, %v395
    %v397 = vsel %vm387, %v350, 0.0
    %v398 = vadd.f32 %v396, %v397
    %v399 = vsel %vm387, %v352, 0.0
    %v400 = vadd.f32 %v398, %v399
    %v401 = vsel %vm387, %v354, 0.0
    %v402 = vadd.f32 %v400, %v401
    %v403 = vsel %vm387, %v356, 0.0
    %v404 = vadd.f32 %v402, %v403
    %v405 = vsel %vm387, %v358, 0.0
    %v406 = vadd.f32 %v404, %v405
    %v407 = vsel %vm387, %v360, 0.0
    %v408 = vadd.f32 %v406, %v407
    %v409 = vsel %vm387, %v362, 0.0
    %v410 = vadd.f32 %v408, %v409
    %v411 = vsel %vm387, %v364, 0.0
    %v412 = vadd.f32 %v410, %v411
    %v413 = vsel %vm387, %v366, 0.0
    %v414 = vadd.f32 %v412, %v413
    %v415 = vsel %vm387, %v368, 0.0
    %v416 = vadd.f32 %v414, %v415
    %v417 = vsel %vm387, %v370, 0.0
    %v418 = vadd.f32 %v416, %v417
    %419 = vadd.xlane.f32.xlu0 %v418
    %v420 = vpop.xlane.xlu0 %419
    %v421 = vrot.slane %v420, 4
    %v422 = vadd.f32 %v420, %v421
    %v423 = vrot.slane %v422, 2
    %v424 = vadd.f32 %v422, %v423
    %v425 = vrot.slane %v424, 1
    %v426 = vadd.f32 %v424, %v425
    %s427 = vtos %v426
    %v428 = vstv %s427
    %v429 = vadd.f32 %v306, %v428
    %430 = vst.msk [vmem:[#allocation6] sm:$0x1] %vm304, %v429
    // Predicated region
    $region14: #{tpu_custom_call.1} parent=1 // pred_check
      _
    $region15: #{tpu_custom_call.1} parent=1 // pred_check_branch
      %432 = sbr.rel (0) target = $region17
    $region16: #{tpu_custom_call.1} parent=1 // pred_region
      %s434 = ssub.s32 16, 16
      %435 = vsyncadd [#allocation4], %s434
      %s437 = sshll.u32 [#allocation5], 4
      %s438 = int_to_ptr.vmem [resolvable:$true] %s437
      %440 = dma.vmem_to_hbm [thread:$0]  %s438, 16, %s1, [#allocation4]
    $region17: #{tpu_custom_call.1} parent=1 // pred_fallthru
      _
    // Predicated region
    $region18: #{tpu_custom_call.1} parent=1 // pred_check
      _
    $region19: #{tpu_custom_call.1} parent=1 // pred_check_branch
      %442 = sbr.rel (0) target = $region21
    $region20: #{tpu_custom_call.1} parent=1 // pred_region
      %s444 = ssub.s32 16, 16
      %445 = vsyncadd [#allocation7], %s444
      %s447 = sshll.u32 [#allocation6], 4
      %s448 = int_to_ptr.vmem [resolvable:$true] %s447
      %450 = dma.vmem_to_hbm [thread:$0]  %s448, 16, %s2, [#allocation7]
    $region21: #{tpu_custom_call.1} parent=1 // pred_fallthru
      _
    // Predicated region
    $region22: #{tpu_custom_call.1} parent=1 // pred_check
      _
    $region23: #{tpu_custom_call.1} parent=1 // pred_check_branch
      %452 = sbr.rel (0) target = $region25
    $region24: #{tpu_custom_call.1} parent=1 // pred_region
      %453 = dma.done [#allocation4], 16
    $region25: #{tpu_custom_call.1} parent=1 // pred_fallthru
      _
    // Predicated region
    $region26: #{tpu_custom_call.1} parent=1 // pred_check
      _
    $region27: #{tpu_custom_call.1} parent=1 // pred_check_branch
      %455 = sbr.rel (0) target = $region29
    $region28: #{tpu_custom_call.1} parent=1 // pred_region
      %456 = dma.done [#allocation7], 16
    $region29: #{tpu_custom_call.1} parent=1 // pred_fallthru
      _
    %457 = vsyncpa [#allocation3], 1
    %458 = vsyncpa [#allocation4], 1
    %459 = vsyncpa [#allocation7], 1

</llo_original>
